<compile_context>
chip_gen: v7x
topology: tpu7x:2x2x1
jax: 0.10.0
libtpu: 0.0.40
codegen_flags: <defaults>
</compile_context>

<pallas_src>
import functools

import jax
import jax.numpy as jnp
from jax import lax
from jax.experimental import pallas as pl
from jax.experimental.pallas import tpu as pltpu

_LANES = 512  # lane-dense output width (multiple of 128)


def _dropout_kernel(seed_ref, x_ref, o_ref, *, threshold24, inv_keep, block_rows):
    tm, tn = x_ref.shape
    # Global flat element index for this tile (counter RNG => tiling-invariant).
    row0 = (pl.program_id(0) * block_rows).astype(jnp.uint32)
    rows = lax.broadcasted_iota(jnp.uint32, (tm, tn), 0) + row0
    cols = lax.broadcasted_iota(jnp.uint32, (tm, tn), 1)
    idx = rows * jnp.uint32(tn) + cols
    # NOTE: flat index wraps for arrays >2^32 elements (RNG stream repeats).

    # Seed-mixed avalanche (2 mul + 2 xor-shift).  The leading xor-shift of the
    # full lowbias32 is dropped: the varying input bits are the low counter
    # bits, so it only xored in a constant and cost 2 VALU ops for nothing.
    seed = seed_ref[0].astype(jnp.uint32) * jnp.uint32(0x9E3779B9)
    h = idx + seed
    h = h * jnp.uint32(0x7FEB352D)
    h = h ^ (h >> 15)
    h = h * jnp.uint32(0x846CA68B)
    h = h ^ (h >> 16)

    # Integer-domain Bernoulli(keep_prob): top 24 bits vs precomputed threshold.
    keep = (h >> 8).astype(jnp.int32) < jnp.int32(threshold24)

    # Inverted-dropout scale + select in the input's native dtype (bf16 stays
    # bf16 on v6e/v7x; Mosaic widens internally on v5e where needed).
    vals = x_ref[...] * jnp.asarray(inv_keep, dtype=x_ref.dtype)
    o_ref[...] = jnp.where(keep, vals, jnp.zeros_like(vals))


def _block_bytes_for_device() -> int:
    """Per-buffer byte budget: conservative on v5e, larger on v6e/v7x."""
    try:
        kind = jax.devices()[0].device_kind.lower()
    except Exception:
        return 2 << 20
    if "v5e" in kind or "v5 lite" in kind or "lite" in kind:
        return 2 << 20   # 16 MiB default scoped VMEM; 4 x 2 MiB buffers fit
    return 4 << 20       # v6e/v7x: amortize ~0.35us/step; 4 x 4 MiB << 32 MiB


def dropout(x: jax.Array, *, p: float = 0.5, seed: int = 0,
            training: bool = True, block_rows: int | None = None,
            donate: bool = False) -> jax.Array:
    """Pallas TPU dropout matching the PyTorch Dropout module's forward."""
    if not training or p == 0.0:
        return x
    if p >= 1.0:
        return jnp.zeros_like(x)
    keep_prob = 1.0 - float(p)

    orig_shape = x.shape
    total = x.size
    itemsize = jnp.dtype(x.dtype).itemsize

    # Lane-dense 2-D view of the flat element stream; pad the tail to a full row.
    flat = x.reshape(-1)
    pad = (-total) % _LANES
    if pad:
        flat = jnp.pad(flat, (0, pad))
    x2 = flat.reshape(-1, _LANES)
    M = x2.shape[0]

    # Row tile from the byte budget, rounded to the dtype-native sublane multiple.
    sublane = max(8, 32 // itemsize)              # 8 f32 / 16 bf16 / 32 int8
    if block_rows is None:
        block_rows = _block_bytes_for_device() // (_LANES * itemsize)
    tm = max(sublane, (int(block_rows) // sublane) * sublane)
    tm = min(tm, M)                               # tm == M is always a legal block
    grid = (pl.cdiv(M, tm),)

    threshold24 = min(int(round(keep_prob * (1 << 24))), 1 << 24)
    kernel = functools.partial(
        _dropout_kernel,
        threshold24=threshold24,
        inv_keep=1.0 / keep_prob,
        block_rows=tm,
    )

    seed_arr = jnp.asarray([seed], dtype=jnp.int32)
    out2 = pl.pallas_call(
        kernel,
        out_shape=jax.ShapeDtypeStruct((M, _LANES), x2.dtype),
        grid_spec=pltpu.PrefetchScalarGridSpec(
            num_scalar_prefetch=1,                # seed lands in SMEM
            grid=grid,
            in_specs=[pl.BlockSpec((tm, _LANES), lambda i, seed_ref: (i, 0))],
            out_specs=pl.BlockSpec((tm, _LANES), lambda i, seed_ref: (i, 0)),
        ),
        compiler_params=pltpu.CompilerParams(
            dimension_semantics=("parallel",),    # independent tiles -> megacore
        ),
        cost_estimate=pl.CostEstimate(
            flops=16 * M * _LANES,
            transcendentals=0,
            bytes_accessed=2 * M * _LANES * itemsize,
        ),
        input_output_aliases=({1: 0} if donate else {}),
    )(seed_arr, x2)

    out_flat = out2.reshape(-1)
    if pad:
        out_flat = out_flat[:total]
    return out_flat.reshape(orig_shape)


if __name__ == "__main__":
    key = jax.random.PRNGKey(0)
    # Small MLP-style activation: (batch=2, C=4, H=16, W=16).
    x = jax.random.normal(key, (2, 4, 16, 16), dtype=jnp.float32)

    p = 0.5
    y_train = jax.block_until_ready(dropout(x, p=p, seed=1234, training=True))
    y_eval = jax.block_until_ready(dropout(x, p=p, training=False))

    # Eval mode must be identity.
    assert jnp.array_equal(y_eval, x)

    # Training mode: every output is either 0 or x / (1 - p).
    scaled = x / (1.0 - p)
    is_zero = jnp.isclose(y_train, 0.0, atol=1e-6)
    is_scaled = jnp.isclose(y_train, scaled, rtol=1e-5, atol=1e-6)
    assert bool(jnp.all(is_zero | is_scaled))

    # Keep-rate should be roughly 1 - p.
    keep_frac = float(jnp.mean(is_scaled.astype(jnp.float32)))
    assert 0.4 < keep_frac < 0.6, f"unexpected keep fraction {keep_frac}"

    # Determinism: same seed -> identical mask.
    y_again = jax.block_until_ready(dropout(x, p=p, seed=1234, training=True))
    assert jnp.array_equal(y_train, y_again)

    # Decomposition invariance: multi-step grid gives the same mask as one tile.
    xb = jax.random.normal(jax.random.PRNGKey(1), (64, 512), dtype=jnp.float32)
    yb_tiled = jax.block_until_ready(
        dropout(xb, p=p, seed=7, training=True, block_rows=16))  # 4 grid steps
    yb_full = jax.block_until_ready(dropout(xb, p=p, seed=7, training=True))
    assert jnp.array_equal(yb_tiled, yb_full)

    # Ragged tail path (total not a multiple of 512) exercises pad + slice.
    xt = jax.random.normal(jax.random.PRNGKey(2), (3, 50), dtype=jnp.float32)
    yt = jax.block_until_ready(dropout(xt, p=0.3, seed=5, training=True))
    st = xt / 0.7
    assert bool(jnp.all(jnp.isclose(yt, 0.0, atol=1e-6)
                        | jnp.isclose(yt, st, rtol=1e-5, atol=1e-6)))

    # p = 1.0 drops everything (PyTorch behavior).
    assert bool(jnp.all(dropout(x, p=1.0, seed=1, training=True) == 0.0))

    print("KERNEL_OK")
</pallas_src>

<mosaic_0001>
module attributes {stable_mosaic.version = 11 : i64} {
  func.func @_dropout_kernel(%arg0: i32, %arg1: memref<1xi32, #tpu.memory_space<smem>>, %arg2: memref<4x512xf32, #tpu.memory_space<vmem>>, %arg3: memref<4x512xf32, #tpu.memory_space<vmem>>) attributes {dimension_semantics = [#tpu.dimension_semantics<parallel>], iteration_bounds = array<i64: 1>, scalar_prefetch = 1 : i64, scratch_operands = 0 : i64, tpu.core_type = #tpu.core_type<tc>, window_params = [{transform_indices = @transform_0, window_bounds = array<i64: 4, 512>}, {transform_indices = @transform_1, window_bounds = array<i64: 4, 512>}]} {
    %c4_i32 = arith.constant 4 : i32
    %0 = arith.muli %arg0, %c4_i32 : i32
    %1 = tpu.iota {dimensions = array<i32: 0>} : vector<4x512xi32>
    %2 = vector.broadcast %0 : i32 to vector<4x512xi32>
    %3 = arith.addi %1, %2 : vector<4x512xi32>
    %4 = tpu.iota {dimensions = array<i32: 1>} : vector<4x512xi32>
    %c512_i32 = arith.constant 512 : i32
    %5 = vector.broadcast %c512_i32 : i32 to vector<4x512xi32>
    %6 = arith.muli %3, %5 : vector<4x512xi32>
    %7 = arith.addi %6, %4 : vector<4x512xi32>
    %c0 = arith.constant 0 : index
    %8 = memref.load %arg1[%c0] : memref<1xi32, #tpu.memory_space<smem>>
    %c-1640531527_i32 = arith.constant -1640531527 : i32
    %9 = arith.muli %8, %c-1640531527_i32 : i32
    %10 = vector.broadcast %9 : i32 to vector<4x512xi32>
    %11 = arith.addi %7, %10 : vector<4x512xi32>
    %c2146121005_i32 = arith.constant 2146121005 : i32
    %12 = vector.broadcast %c2146121005_i32 : i32 to vector<4x512xi32>
    %13 = arith.muli %11, %12 : vector<4x512xi32>
    %c15_i32 = arith.constant 15 : i32
    %14 = vector.broadcast %c15_i32 : i32 to vector<4x512xi32>
    %15 = arith.shrui %13, %14 : vector<4x512xi32>
    %16 = arith.xori %13, %15 : vector<4x512xi32>
    %c-2073254261_i32 = arith.constant -2073254261 : i32
    %17 = vector.broadcast %c-2073254261_i32 : i32 to vector<4x512xi32>
    %18 = arith.muli %16, %17 : vector<4x512xi32>
    %c16_i32 = arith.constant 16 : i32
    %19 = vector.broadcast %c16_i32 : i32 to vector<4x512xi32>
    %20 = arith.shrui %18, %19 : vector<4x512xi32>
    %21 = arith.xori %18, %20 : vector<4x512xi32>
    %c8_i32 = arith.constant 8 : i32
    %22 = vector.broadcast %c8_i32 : i32 to vector<4x512xi32>
    %23 = arith.shrui %21, %22 : vector<4x512xi32>
    %c8388608_i32 = arith.constant 8388608 : i32
    %24 = vector.broadcast %c8388608_i32 : i32 to vector<4x512xi32>
    %25 = arith.cmpi slt, %23, %24 : vector<4x512xi32>
    %c0_0 = arith.constant 0 : index
    %c0_1 = arith.constant 0 : index
    %26 = vector.load %arg2[%c0_0, %c0_1] : memref<4x512xf32, #tpu.memory_space<vmem>>, vector<4x512xf32>
    %cst = arith.constant 2.000000e+00 : f32
    %27 = vector.broadcast %cst : f32 to vector<4x512xf32>
    %28 = arith.mulf %26, %27 : vector<4x512xf32>
    %cst_2 = arith.constant 0.000000e+00 : f32
    %29 = vector.broadcast %cst_2 : f32 to vector<4x512xf32>
    %30 = arith.select %25, %28, %29 : vector<4x512xi1>, vector<4x512xf32>
    %c0_3 = arith.constant 0 : index
    %c0_4 = arith.constant 0 : index
    %31 = vector.load %arg3[%c0_3, %c0_4] : memref<4x512xf32, #tpu.memory_space<vmem>>, vector<4x512xf32>
    tpu.vector_store %arg3[%c0_3, %c0_4], %30 {strides = array<i32>} : memref<4x512xf32, #tpu.memory_space<vmem>>, vector<4x512xf32>,
    return
  }
  func.func @transform_0(%arg0: i32, %arg1: memref<1xi32, #tpu.memory_space<smem>>) -> (i32, i32) {
    %c0_i32 = arith.constant 0 : i32
    %c0_i32_0 = arith.constant 0 : i32
    return %arg0, %c0_i32 : i32, i32
  }
  func.func @transform_1(%arg0: i32, %arg1: memref<1xi32, #tpu.memory_space<smem>>) -> (i32, i32) {
    %c0_i32 = arith.constant 0 : i32
    %c0_i32_0 = arith.constant 0 : i32
    return %arg0, %c0_i32 : i32, i32
  }
}

</mosaic_0001>

<llo_original>
// kernel: tpu_custom_call.1
$region0: #{tpu_custom_call.1}
  #allocation0 [shape = 'u32[]', space=smem, size = 0x4, offset = 0x4, fixed_abs, tag = 'smem constant byte address 0x4 - core index']
  #allocation1 [shape = 'u32[144,128]{1,0:T(1,128)}', space=vmem, size = 0x12000, scoped, tag = 'internal scratch']
  #allocation2 [shape = 's32[1]{0}', space=sflag, size = 0x4, scoped, tag = 'scoped memory for tpu_custom_call.1']
  #allocation3 [shape = 's32[1]{0:T(128)S(6)}', space=smem, size = 0x200, scoped, tag = 'prefetched SMEM operand 0']
  %s0 = inlined_call_operand.<no memory space> [shape: s32[1], index: 0, kind: input, shape index: {}]
  %s1 = inlined_call_operand.hbm [shape: f32[4,512], index: 1, kind: input, shape index: {}]
  %s2 = inlined_call_operand.hbm [shape: f32[4,512], index: 2, kind: output, shape index: {}]
  %s3 = sld [smem:[#allocation0]]
  $region18: #{tpu_custom_call.1} parent=0
    _
  %s5 = ssub.s32 1, %s3
  %s6 = scalar_select 0, %s5, %s3
  %7 = sst [smem:[#allocation3]] %s0
  $region1: #{tpu_custom_call.1} parent=0
    #allocation4 [shape = 'u8[8192]{0}', space=vmem, size = 0x2000, scoped, tag = 'input window, operand 1, single buffered']
    #allocation5 [shape = 's32[1]{0}', space=sflag, size = 0x4, scoped, tag = 'scoped memory for tpu_custom_call.1']
    #allocation6 [shape = 's32[1]{0}', space=sflag, size = 0x4, scoped, tag = 'scoped memory for tpu_custom_call.1']
    #allocation7 [shape = 'u8[8192]{0}', space=vmem, size = 0x2000, scoped, tag = 'output window, operand 0, single buffered']
    %8 = vsyncpa [#allocation5], 0
    %9 = vsyncpa [#allocation6], 0
    // Predicated region
    $region2: #{tpu_custom_call.1} parent=1 // pred_check
      _
    $region3: #{tpu_custom_call.1} parent=1 // pred_check_branch
      %11 = sbr.rel (0) target = $region5
    $region4: #{tpu_custom_call.1} parent=1 // pred_region
      %s13 = ssub.s32 256, 256
      %14 = vsyncadd [#allocation5], %s13
      %s16 = sshll.u32 [#allocation4], 4
      %s17 = int_to_ptr.vmem [resolvable:$true] %s16
      %19 = dma.hbm_to_vmem [thread:$0]  %s1, 256, %s17, [#allocation5]
    $region5: #{tpu_custom_call.1} parent=1 // pred_fallthru
      _
    // Predicated region
    $region6: #{tpu_custom_call.1} parent=1 // pred_check
      _
    $region7: #{tpu_custom_call.1} parent=1 // pred_check_branch
      %21 = sbr.rel (0) target = $region9
    $region8: #{tpu_custom_call.1} parent=1 // pred_region
      %22 = dma.done [#allocation5], 256
    $region9: #{tpu_custom_call.1} parent=1 // pred_fallthru
      _
    %s23 = smul.u32 0, 4
    %v24 = vlaneseq
    %v25 = vshrl.u32 %v24, 7
    %v26 = vstv %s23
    %v27 = vadd.s32 %v25, %v26
    %v28 = vlaneseq
    %v29 = vand.u32 %v28, 127
    %v30 = vadd.s32 %v29, 128
    %v31 = vadd.s32 %v29, 256
    %v32 = vadd.s32 %v29, 384
    %v33 = vmul.u32 %v27, 512
    %v34 = vadd.s32 %v33, %v29
    %v35 = vadd.s32 %v33, %v30
    %v36 = vadd.s32 %v33, %v31
    %v37 = vadd.s32 %v33, %v32
    %s38 = sld [smem:[#allocation3]]
    %s39 = smul.u32 %s38, 2654435769
    %v40 = vstv %s39
    %v41 = vadd.s32 %v34, %v40
    %v42 = vadd.s32 %v35, %v40
    %v43 = vadd.s32 %v36, %v40
    %v44 = vadd.s32 %v37, %v40
    %v45 = vmul.u32 %v41, 2146121005
    %v46 = vmul.u32 %v42, 2146121005
    %v47 = vmul.u32 %v43, 2146121005
    %v48 = vmul.u32 %v44, 2146121005
    %v49 = vshrl.u32 %v45, 15
    %v50 = vshrl.u32 %v46, 15
    %v51 = vshrl.u32 %v47, 15
    %v52 = vshrl.u32 %v48, 15
    %v53 = vxor.u32 %v45, %v49
    %v54 = vxor.u32 %v46, %v50
    %v55 = vxor.u32 %v47, %v51
    %v56 = vxor.u32 %v48, %v52
    %v57 = vmul.u32 %v53, 2221713035
    %v58 = vmul.u32 %v54, 2221713035
    %v59 = vmul.u32 %v55, 2221713035
    %v60 = vmul.u32 %v56, 2221713035
    %v61 = vshrl.u32 %v57, 16
    %v62 = vshrl.u32 %v58, 16
    %v63 = vshrl.u32 %v59, 16
    %v64 = vshrl.u32 %v60, 16
    %v65 = vxor.u32 %v57, %v61
    %v66 = vxor.u32 %v58, %v62
    %v67 = vxor.u32 %v59, %v63
    %v68 = vxor.u32 %v60, %v64
    %v69 = vshrl.u32 %v65, 8
    %v70 = vshrl.u32 %v66, 8
    %v71 = vshrl.u32 %v67, 8
    %v72 = vshrl.u32 %v68, 8
    %vm73 = vcmp.lt.s32.totalorder %v69, 8388608
    %vm74 = vcmp.lt.s32.totalorder %v70, 8388608
    %vm75 = vcmp.lt.s32.totalorder %v71, 8388608
    %vm76 = vcmp.lt.s32.totalorder %v72, 8388608
    %v77 = vld [vmem:[#allocation4] sm:$0xff]
    %v78 = vld [vmem:[#allocation4 + $0x8] sm:$0xff]
    %v79 = vmul.f32 %v77, 2.0
    %v80 = vmul.f32 %v78, 2.0
    %v83 = vcombine.high %v79, %v79
    %v84 = vcombine.high %v80, %v80
    %v87 = vsel %vm73, %v79, 0.0
    %v88 = vsel %vm74, %v83, 0.0
    %v89 = vsel %vm75, %v80, 0.0
    %v90 = vsel %vm76, %v84, 0.0
    %v95 = vcombine.low %v87, %v88
    %v96 = vcombine.low %v89, %v90
    %99 = vst [vmem:[#allocation7] sm:$0xff] %v95
    %100 = vst [vmem:[#allocation7 + $0x8] sm:$0xff] %v96
    // Predicated region
    $region10: #{tpu_custom_call.1} parent=1 // pred_check
      _
    $region11: #{tpu_custom_call.1} parent=1 // pred_check_branch
      %102 = sbr.rel (0) target = $region13
    $region12: #{tpu_custom_call.1} parent=1 // pred_region
      %s104 = ssub.s32 256, 256
      %105 = vsyncadd [#allocation6], %s104
      %s107 = sshll.u32 [#allocation7], 4
      %s108 = int_to_ptr.vmem [resolvable:$true] %s107
      %110 = dma.vmem_to_hbm [thread:$0]  %s108, 256, %s2, [#allocation6]
    $region13: #{tpu_custom_call.1} parent=1 // pred_fallthru
      _
    // Predicated region
    $region14: #{tpu_custom_call.1} parent=1 // pred_check
      _
    $region15: #{tpu_custom_call.1} parent=1 // pred_check_branch
      %112 = sbr.rel (0) target = $region17
    $region16: #{tpu_custom_call.1} parent=1 // pred_region
      %113 = dma.done [#allocation6], 256
    $region17: #{tpu_custom_call.1} parent=1 // pred_fallthru
      _
    %114 = vsyncpa [#allocation5], 1
    %115 = vsyncpa [#allocation6], 1

</llo_original>
